<compile_context>
chip_gen: v7x
topology: tpu7x:2x2x1
jax: 0.10.0
libtpu: 0.0.40
codegen_flags: <defaults>
</compile_context>

<pallas_src>
import math
from functools import partial

import jax
import jax.numpy as jnp
from jax import lax
from jax.experimental import pallas as pl
from jax.experimental.pallas import tpu as pltpu

_LANE = 128
# ~1M elements per input block: ~4 MiB f32 / ~2 MiB bf16.  With the mirrored
# x*2 output block and double buffering this is ~16 MiB of VMEM for f32.
_TARGET_BLOCK_ELEMS = 1 << 20
_VMEM_LIMIT_BYTES = 32 * 1024 * 1024   # safe on v5e/v6e/v7x scoped budgets


def _round_up(a, m):
    return (a + m - 1) // m * m


def _sublane_mult(dtype):
    """Minimum sublane tile for a dtype: 8 (f32), 16 (bf16/f16), 32 (int8)."""
    itemsize = jnp.dtype(dtype).itemsize
    return max(8, 8 * (4 // max(1, itemsize)))


# ----------------------------------------------------------------------------
# Large-N path: per-element lane-dense slabs  (B2, R2, 128)
# grid = (batch blocks [parallel], row chunks [arbitrary/reduction])
# ----------------------------------------------------------------------------
def _sum_mul_kernel_3d(x_ref, sum_ref, mul_ref, acc_ref, *, rows_valid_last, tr):
    r = pl.program_id(1)
    nr = pl.num_programs(1)

    @pl.when(r == 0)
    def _():
        acc_ref[...] = jnp.zeros_like(acc_ref)

    x = x_ref[...]                               # (TB, TR, 128), input dtype
    mul_ref[...] = x * 2                         # streamed elementwise output

    xf = x.astype(jnp.float32)
    if rows_valid_last != tr:
        # Last row chunk is partial: OOB rows contain garbage -> mask for sum.
        row_ids = lax.broadcasted_iota(jnp.int32, xf.shape, dimension=1)
        limit = jnp.where(r == nr - 1, rows_valid_last, tr)
        xf = jnp.where(row_ids < limit, xf, 0.0)
    acc_ref[...] += jnp.sum(xf, axis=1)          # (TB, 128) in-lane partials

    @pl.when(r == nr - 1)
    def _():
        # One cross-lane reduce + tiny store per batch block.
        sum_ref[...] = jnp.sum(acc_ref[...], axis=1, keepdims=True)[..., None]


def _run_3d(x, B, N, R, smult):
    dtype = x.dtype
    # Virtual batch split so the parallel axis has >= 2 blocks (v7x 2 TCs)
    # even for B == 1; partial sums are added back in the wrapper.
    V = 1
    if B == 1 and R % 2 == 0 and (R // 2) >= smult:
        V = 2
    B2 = B * V
    R2 = R // V

    target_rows = max(smult, _TARGET_BLOCK_ELEMS // _LANE)   # 8192 rows
    if R2 <= target_rows:
        n_chunks = 1
        TR = R2                                   # full dim: no sublane req.
        TB = max(1, target_rows // max(TR, 1))    # fuse small batch elements
        if B2 >= 2:
            TB = min(TB, (B2 + 1) // 2)           # keep >= 2 parallel blocks
        TB = min(TB, B2)
    else:
        n_chunks = pl.cdiv(R2, target_rows)
        TR = _round_up(pl.cdiv(R2, n_chunks), smult)
        n_chunks = pl.cdiv(R2, TR)
        TB = 1
    rows_valid_last = R2 - (n_chunks - 1) * TR    # rows in last chunk (<= TR)

    x3 = x.reshape(B2, R2, _LANE)                 # free reshape (N % 128 == 0)
    grid = (pl.cdiv(B2, TB), n_chunks)

    kernel = partial(_sum_mul_kernel_3d, rows_valid_last=rows_valid_last, tr=TR)
    sums3, muls3 = pl.pallas_call(
        kernel,
        out_shape=(
            jax.ShapeDtypeStruct((B2, 1, 1), jnp.float32),
            jax.ShapeDtypeStruct((B2, R2, _LANE), dtype),
        ),
        grid_spec=pltpu.PrefetchScalarGridSpec(
            num_scalar_prefetch=0,
            grid=grid,
            in_specs=[pl.BlockSpec((TB, TR, _LANE), lambda b, r: (b, r, 0))],
            out_specs=[
                # (TB, 1, 1): last two dims equal full dims -> TB unconstrained.
                pl.BlockSpec((TB, 1, 1), lambda b, r: (b, 0, 0)),
                pl.BlockSpec((TB, TR, _LANE), lambda b, r: (b, r, 0)),
            ],
            scratch_shapes=[pltpu.VMEM((TB, _LANE), jnp.float32)],
        ),
        compiler_params=pltpu.CompilerParams(
            dimension_semantics=("parallel", "arbitrary"),
            vmem_limit_bytes=_VMEM_LIMIT_BYTES,
        ),
    )(x3)

    if V > 1:
        sums = sums3.reshape(B, V).sum(axis=1)
    else:
        sums = sums3.reshape(B)
    muls = muls3.reshape(x.shape)
    return sums, muls


# ----------------------------------------------------------------------------
# Small-N / unaligned-N path: batch along sublanes of a 2-D (B, N) slab.
# grid = (batch-row blocks [parallel], lane chunks [arbitrary/reduction])
# ----------------------------------------------------------------------------
def _sum_mul_kernel_2d(x_ref, sum_ref, mul_ref, acc_ref, *, lanes_valid_last, tl):
    l = pl.program_id(1)
    nl = pl.num_programs(1)

    @pl.when(l == 0)
    def _():
        acc_ref[...] = jnp.zeros_like(acc_ref)

    x = x_ref[...]                               # (TBR, TL), input dtype
    mul_ref[...] = x * 2

    xf = x.astype(jnp.float32)
    if lanes_valid_last != tl:
        lane_ids = lax.broadcasted_iota(jnp.int32, xf.shape, dimension=1)
        limit = jnp.where(l == nl - 1, lanes_valid_last, tl)
        xf = jnp.where(lane_ids < limit, xf, 0.0)
    acc_ref[...] += jnp.sum(xf, axis=1, keepdims=True)   # (TBR, 1)

    @pl.when(l == nl - 1)
    def _():
        sum_ref[...] = acc_ref[...]


def _run_2d(x, B, N, smult):
    dtype = x.dtype
    x2 = x.reshape(B, N)                          # free reshape

    tl_cap = max(_LANE, _TARGET_BLOCK_ELEMS // smult)
    if N <= tl_cap:
        TL = N                                    # full dim: no lane req.
        n_lane_chunks = 1
    else:
        TL = (tl_cap // _LANE) * _LANE
        n_lane_chunks = pl.cdiv(N, TL)
    lanes_valid_last = N - (n_lane_chunks - 1) * TL

    TBR = max(1, _TARGET_BLOCK_ELEMS // max(TL, 1))
    if B > smult:
        # keep >= 2 batch blocks so v7x can shard across both TensorCores
        TBR = min(TBR, max(smult, ((B + 1) // 2) // smult * smult))
    if TBR >= B:
        TBR = B                                   # full dim: no sublane req.
    else:
        TBR = max(smult, TBR // smult * smult)    # sublane-tile aligned

    grid = (pl.cdiv(B, TBR), n_lane_chunks)
    kernel = partial(_sum_mul_kernel_2d, lanes_valid_last=lanes_valid_last, tl=TL)
    sums2, muls2 = pl.pallas_call(
        kernel,
        out_shape=(
            jax.ShapeDtypeStruct((B, 1), jnp.float32),
            jax.ShapeDtypeStruct((B, N), dtype),
        ),
        grid_spec=pltpu.PrefetchScalarGridSpec(
            num_scalar_prefetch=0,
            grid=grid,
            in_specs=[pl.BlockSpec((TBR, TL), lambda b, l: (b, l))],
            out_specs=[
                pl.BlockSpec((TBR, 1), lambda b, l: (b, 0)),
                pl.BlockSpec((TBR, TL), lambda b, l: (b, l)),
            ],
            scratch_shapes=[pltpu.VMEM((TBR, 1), jnp.float32)],
        ),
        compiler_params=pltpu.CompilerParams(
            dimension_semantics=("parallel", "arbitrary"),
            vmem_limit_bytes=_VMEM_LIMIT_BYTES,
        ),
    )(x2)
    return sums2.reshape(B), muls2.reshape(x.shape)


# ----------------------------------------------------------------------------
# Wrapper
# ----------------------------------------------------------------------------
@jax.jit
def _sum_mean_mul_stacked(x):
    """Returns (sums[B], means[B], x*2 with x's shape) as stacked arrays."""
    orig_dtype = x.dtype
    B = x.shape[0]
    per_elem = x.shape[1:]
    N = math.prod(per_elem) if per_elem else 1
    smult = _sublane_mult(orig_dtype)
    R = pl.cdiv(N, _LANE)

    if N % _LANE == 0 and R >= smult:
        sums_f32, muls = _run_3d(x, B, N, R, smult)
    else:
        sums_f32, muls = _run_2d(x, B, N, smult)

    means_f32 = sums_f32 / jnp.float32(N)
    return sums_f32.astype(orig_dtype), means_f32.astype(orig_dtype), muls


def batched_sum_mean_mul(x):
    """Mirrors PtModule.forward: list of (sum, mean, tensor*2) per batch elem."""
    sums, means, muls = _sum_mean_mul_stacked(x)
    # Python list-of-tuples only at the API boundary (host side).
    return [(sums[b], means[b], muls[b]) for b in range(sums.shape[0])]


if __name__ == "__main__":
    def check(x, sum_rtol=1e-4, sum_atol=1e-3):
        sums, means, muls = _sum_mean_mul_stacked(x)
        jax.block_until_ready((sums, means, muls))
        xf = x.reshape(x.shape[0], -1)
        ref_sums = jnp.sum(xf, axis=1)
        ref_means = jnp.mean(xf, axis=1)
        ref_muls = x * 2
        assert jnp.allclose(sums, ref_sums, rtol=sum_rtol, atol=sum_atol), (sums, ref_sums)
        assert jnp.allclose(means, ref_means, rtol=sum_rtol, atol=1e-5), (means, ref_means)
        assert jnp.allclose(muls, ref_muls, rtol=0.0, atol=1e-6)

    # Primary shape implied by the module (batch=2, channels=4, 16x16 spatial).
    x = jax.random.normal(jax.random.PRNGKey(0), (2, 4, 16, 16), dtype=jnp.float32)
    check(x)

    # Small / lane-unaligned per-element tensors -> batch-on-sublanes path.
    x_small = jax.random.normal(jax.random.PRNGKey(1), (4, 3, 5), dtype=jnp.float32)
    check(x_small)

    # Larger per-element tensors -> multi-chunk reduction with the accumulator.
    x_big = jax.random.normal(jax.random.PRNGKey(2), (2, 8192, 256), dtype=jnp.float32)
    check(x_big, sum_rtol=1e-3, sum_atol=0.5)

    # Module-equivalent list-of-tuples API.
    result = batched_sum_mean_mul(x)
    assert len(result) == x.shape[0]

    print("KERNEL_OK")
</pallas_src>

<mosaic_0001>
module attributes {stable_mosaic.version = 11 : i64} {
  func.func @_sum_mul_kernel_3d(%arg0: i32, %arg1: i32, %arg2: memref<1x8x128xf32, #tpu.memory_space<vmem>>, %arg3: memref<1x1x1xf32, #tpu.memory_space<vmem>>, %arg4: memref<1x8x128xf32, #tpu.memory_space<vmem>>, %arg5: memref<1x128xf32, #tpu.memory_space<vmem>>) attributes {dimension_semantics = [#tpu.dimension_semantics<parallel>, #tpu.dimension_semantics<arbitrary>], iteration_bounds = array<i64: 2, 1>, scalar_prefetch = 0 : i64, scratch_operands = 1 : i64, tpu.core_type = #tpu.core_type<tc>, window_params = [{transform_indices = @transform_0, window_bounds = array<i64: 1, 8, 128>}, {transform_indices = @transform_1, window_bounds = array<i64: 1, 1, 1>}, {transform_indices = @transform_2, window_bounds = array<i64: 1, 8, 128>}]} {
    %c0_i32 = arith.constant 0 : i32
    %0 = arith.cmpi eq, %arg1, %c0_i32 : i32
    %1 = arith.extui %0 : i1 to i32
    %c0_i32_0 = arith.constant 0 : i32
    %2 = arith.cmpi ne, %1, %c0_i32_0 : i32
    scf.if %2 {
      %cst_13 = arith.constant 0.000000e+00 : f32
      %14 = vector.broadcast %cst_13 : f32 to vector<1x128xf32>
      %c0_14 = arith.constant 0 : index
      %c0_15 = arith.constant 0 : index
      %15 = vector.load %arg5[%c0_14, %c0_15] : memref<1x128xf32, #tpu.memory_space<vmem>>, vector<1x128xf32>
      tpu.vector_store %arg5[%c0_14, %c0_15], %14 {strides = array<i32>} : memref<1x128xf32, #tpu.memory_space<vmem>>, vector<1x128xf32>,
    } else {
    }
    %c0 = arith.constant 0 : index
    %c0_1 = arith.constant 0 : index
    %c0_2 = arith.constant 0 : index
    %3 = vector.load %arg2[%c0, %c0_1, %c0_2] : memref<1x8x128xf32, #tpu.memory_space<vmem>>, vector<1x8x128xf32>
    %cst = arith.constant 2.000000e+00 : f32
    %4 = vector.broadcast %cst : f32 to vector<1x8x128xf32>
    %5 = arith.mulf %3, %4 : vector<1x8x128xf32>
    %c0_3 = arith.constant 0 : index
    %c0_4 = arith.constant 0 : index
    %c0_5 = arith.constant 0 : index
    %6 = vector.load %arg4[%c0_3, %c0_4, %c0_5] : memref<1x8x128xf32, #tpu.memory_space<vmem>>, vector<1x8x128xf32>
    tpu.vector_store %arg4[%c0_3, %c0_4, %c0_5], %5 {strides = array<i32>} : memref<1x8x128xf32, #tpu.memory_space<vmem>>, vector<1x8x128xf32>,
    %c0_6 = arith.constant 0 : index
    %c0_7 = arith.constant 0 : index
    %7 = vector.load %arg5[%c0_6, %c0_7] : memref<1x128xf32, #tpu.memory_space<vmem>>, vector<1x128xf32>
    %cst_8 = arith.constant dense<0.000000e+00> : vector<1x128xf32>
    %8 = vector.multi_reduction <add>, %3, %cst_8 [1] : vector<1x8x128xf32> to vector<1x128xf32>
    %9 = arith.addf %7, %8 : vector<1x128xf32>
    %c0_9 = arith.constant 0 : index
    %c0_10 = arith.constant 0 : index
    %10 = vector.load %arg5[%c0_9, %c0_10] : memref<1x128xf32, #tpu.memory_space<vmem>>, vector<1x128xf32>
    tpu.vector_store %arg5[%c0_9, %c0_10], %9 {strides = array<i32>} : memref<1x128xf32, #tpu.memory_space<vmem>>, vector<1x128xf32>,
    %c0_i32_11 = arith.constant 0 : i32
    %11 = arith.cmpi eq, %arg1, %c0_i32_11 : i32
    %12 = arith.extui %11 : i1 to i32
    %c0_i32_12 = arith.constant 0 : i32
    %13 = arith.cmpi ne, %12, %c0_i32_12 : i32
    scf.if %13 {
      %c0_13 = arith.constant 0 : index
      %c0_14 = arith.constant 0 : index
      %14 = vector.load %arg5[%c0_13, %c0_14] : memref<1x128xf32, #tpu.memory_space<vmem>>, vector<1x128xf32>
      %cst_15 = arith.constant dense<0.000000e+00> : vector<1xf32>
      %15 = vector.multi_reduction <add>, %14, %cst_15 [1] : vector<1x128xf32> to vector<1xf32>
      %16 = vector.shape_cast %15 : vector<1xf32> to vector<1x1xf32>
      %17 = vector.shape_cast %16 : vector<1x1xf32> to vector<1x1x1xf32>
      %c0_16 = arith.constant 0 : index
      %c0_17 = arith.constant 0 : index
      %c0_18 = arith.constant 0 : index
      %18 = vector.load %arg3[%c0_16, %c0_17, %c0_18] : memref<1x1x1xf32, #tpu.memory_space<vmem>>, vector<1x1x1xf32>
      tpu.vector_store %arg3[%c0_16, %c0_17, %c0_18], %17 {strides = array<i32>} : memref<1x1x1xf32, #tpu.memory_space<vmem>>, vector<1x1x1xf32>,
    } else {
    }
    return
  }
  func.func @transform_0(%arg0: i32, %arg1: i32) -> (i32, i32, i32) {
    %c0_i32 = arith.constant 0 : i32
    %c0_i32_0 = arith.constant 0 : i32
    return %arg0, %arg1, %c0_i32 : i32, i32, i32
  }
  func.func @transform_1(%arg0: i32, %arg1: i32) -> (i32, i32, i32) {
    %c0_i32 = arith.constant 0 : i32
    %c0_i32_0 = arith.constant 0 : i32
    %c0_i32_1 = arith.constant 0 : i32
    return %arg0, %c0_i32, %c0_i32_0 : i32, i32, i32
  }
  func.func @transform_2(%arg0: i32, %arg1: i32) -> (i32, i32, i32) {
    %c0_i32 = arith.constant 0 : i32
    %c0_i32_0 = arith.constant 0 : i32
    return %arg0, %arg1, %c0_i32 : i32, i32, i32
  }
}

</mosaic_0001>

<llo_original>
// kernel: _sum_mean_mul_stacked.1
$region0: #{_sum_mean_mul_stacked.1}
  #allocation0 [shape = 'u32[]', space=smem, size = 0x4, offset = 0x4, fixed_abs, tag = 'smem constant byte address 0x4 - core index']
  #allocation1 [shape = 'u32[144,128]{1,0:T(1,128)}', space=vmem, size = 0x12000, scoped, tag = 'internal scratch']
  #allocation2 [shape = 'f32[1,128]{1,0:T(1,128)}', space=vmem, size = 0x200, scoped, tag = 'scratch operand']
  %s0 = inlined_call_operand.vmem [shape: f32[2,8,128], index: 0, kind: input, shape index: {}]
  %s1 = inlined_call_operand.vmem [shape: f32[2,1,1], index: 1, kind: output, shape index: {0}]
  %s2 = inlined_call_operand.vmem [shape: f32[2,8,128], index: 2, kind: output, shape index: {1}]
  %3 = xla_tuple %s1, %s2
  %s4 = sld [smem:[#allocation0]]
  $region53: #{_sum_mean_mul_stacked.1} parent=0
    _
  %s6 = ssub.s32 1, %s4
  %s7 = scalar_select 0, %s6, %s4
  loop: start=0, step=1, limit=4
  $region2: #{_sum_mean_mul_stacked.1} parent=0 // loop_pre_header
    _
  $region3: #{_sum_mean_mul_stacked.1} parent=0 // loop_header
    %s9 = sphi 0, %s13
    %p10 = scmp.ge.s32.totalorder %s9, 4
    %s16 = sphi 0, %s28
    %s17 = sphi 0, %s24
    %s18 = sphi 0, %s16
    %s19 = sphi 0, %s17
    %s20 = sphi 0, %s18
    %s21 = sphi 0, %s19
    %s33 = sphi 0, %s35
    %s36 = sphi 0, %s33
    %s37 = sphi 0, %s36
    %s53 = sphi 0, %s37
    %s59 = sphi 0, %s61
    %s62 = sphi 0, %s59
    %s63 = sphi 0, %s62
    %s79 = sphi 0, %s63
    %s87 = sphi 0, %s89
    %s90 = sphi 0, %s87
    %s91 = sphi 0, %s90
    %s107 = sphi 0, %s91
  $region4: #{_sum_mean_mul_stacked.1} parent=0 // loop_header_branch
    %12 = sbr.rel (%p10) target = $region8
  $region5: #{_sum_mean_mul_stacked.1} parent=0 // loop_body
    %s14 = ssub.s32 %s9, 1
    %s15 = ssub.s32 %s9, 2
    %s22 = sadd.s32 1, %s17
    %p23 = scmp.ge.s32.totalorder %s22, 1
    %s24 = scalar_select %p23, 0, %s22
    %s25 = sadd.s32 1, %s16
    %s26 = scalar_select %p23, %s25, %s16
    %p27 = scmp.ge.s32.totalorder %s26, 2
    %s28 = scalar_select %p27, 0, %s26
    %s29 = ssub.s32 %s16, %s28
    %s30 = ssub.s32 %s17, %s24
    %s31 = sor.u32 %s29, %s30
    %p32 = scmp.eq.s32.totalorder %s31, 0
    %s34 = sadd.s32 %s33, 1
    %s35 = scalar_select %p32, %s33, %s34
    %p38 = pneg %p32
    %p39 = scmp.eq.s32.totalorder %s9, 1
    %p40 = por %p38, %p39
    %p41 = scmp.ne.s32.totalorder %s33, %s36
    %p42 = scmp.eq.s32.totalorder %s9, 0
    %p43 = por %p41, %p42
    %p44 = scmp.ne.s32.totalorder %s33, %s36
    %p45 = scmp.eq.s32.totalorder %s14, 1
    %p46 = por %p44, %p45
    %p47 = scmp.ne.s32.totalorder %s36, %s37
    %p48 = scmp.eq.s32.totalorder %s14, 0
    %p49 = por %p47, %p48
    %p50 = scmp.ne.s32.totalorder %s36, %s37
    %p51 = scmp.eq.s32.totalorder %s15, 1
    %p52 = por %p50, %p51
    %p54 = scmp.ne.s32.totalorder %s37, %s53
    %p55 = scmp.eq.s32.totalorder %s15, 0
    %p56 = por %p54, %p55
    %s57 = ssub.s32 %s16, %s28
    %p58 = scmp.eq.s32.totalorder %s57, 0
    %s60 = sadd.s32 %s59, 1
    %s61 = scalar_select %p58, %s59, %s60
    %p64 = pneg %p58
    %p65 = scmp.eq.s32.totalorder %s9, 1
    %p66 = por %p64, %p65
    %p67 = scmp.ne.s32.totalorder %s59, %s62
    %p68 = scmp.eq.s32.totalorder %s9, 0
    %p69 = por %p67, %p68
    %p70 = scmp.ne.s32.totalorder %s59, %s62
    %p71 = scmp.eq.s32.totalorder %s14, 1
    %p72 = por %p70, %p71
    %p73 = scmp.ne.s32.totalorder %s62, %s63
    %p74 = scmp.eq.s32.totalorder %s14, 0
    %p75 = por %p73, %p74
    %p76 = scmp.ne.s32.totalorder %s62, %s63
    %p77 = scmp.eq.s32.totalorder %s15, 1
    %p78 = por %p76, %p77
    %p80 = scmp.ne.s32.totalorder %s63, %s79
    %p81 = scmp.eq.s32.totalorder %s15, 0
    %p82 = por %p80, %p81
    %s83 = ssub.s32 %s16, %s28
    %s84 = ssub.s32 %s17, %s24
    %s85 = sor.u32 %s83, %s84
    %p86 = scmp.eq.s32.totalorder %s85, 0
    %s88 = sadd.s32 %s87, 1
    %s89 = scalar_select %p86, %s87, %s88
    %p92 = pneg %p86
    %p93 = scmp.eq.s32.totalorder %s9, 1
    %p94 = por %p92, %p93
    %p95 = scmp.ne.s32.totalorder %s87, %s90
    %p96 = scmp.eq.s32.totalorder %s9, 0
    %p97 = por %p95, %p96
    %p98 = scmp.ne.s32.totalorder %s87, %s90
    %p99 = scmp.eq.s32.totalorder %s14, 1
    %p100 = por %p98, %p99
    %p101 = scmp.ne.s32.totalorder %s90, %s91
    %p102 = scmp.eq.s32.totalorder %s14, 0
    %p103 = por %p101, %p102
    %p104 = scmp.ne.s32.totalorder %s90, %s91
    %p105 = scmp.eq.s32.totalorder %s15, 1
    %p106 = por %p104, %p105
    %p108 = scmp.ne.s32.totalorder %s91, %s107
    %p109 = scmp.eq.s32.totalorder %s15, 0
    %p110 = por %p108, %p109
    %p111 = scmp.le.s32.totalorder 1, %s9
    %p112 = scmp.lt.s32.totalorder %s9, 3
    %p113 = pnand %p111, %p112
    %p114 = pneg %p113
    // Predicated region
    $region9: #{_sum_mean_mul_stacked.1} parent=5 // pred_check
      _
    $region10: #{_sum_mean_mul_stacked.1} parent=5 // pred_check_branch
      %116 = sbr.rel (%p113) target = $region12
    $region11: #{_sum_mean_mul_stacked.1} parent=5 // pred_region
      %s117 = ssub.s32 %s9, 1
    $region12: #{_sum_mean_mul_stacked.1} parent=5 // pred_fallthru
      _
    %p118 = scmp.lt.s32.totalorder %s9, 2
    // Predicated region
    $region13: #{_sum_mean_mul_stacked.1} parent=5 // pred_check
      %p119 = pneg %p118
    $region14: #{_sum_mean_mul_stacked.1} parent=5 // pred_check_branch
      %121 = sbr.rel (%p119) target = $region16
    $region15: #{_sum_mean_mul_stacked.1} parent=5 // pred_region
      // Predicated region
      $region17: #{_sum_mean_mul_stacked.1} parent=15 // pred_check
        %p122 = pneg %p43
      $region18: #{_sum_mean_mul_stacked.1} parent=15 // pred_check_branch
        %124 = sbr.rel (%p122) target = $region20
      $region19: #{_sum_mean_mul_stacked.1} parent=15 // pred_region
        %p125 = scmp.lt.s32.totalorder %s16, 1
        %s126 = scalar_select %p125, %s16, 1
        %p127 = scmp.lt.s32.totalorder %s17, 0
        %s128 = scalar_select %p127, %s17, 0
        %s129 = sadd.s32 %s128, %s126
        %s130 = smul.addr %s129, 8
        %s131 = scalar_lea.vmem %s0, %s130
      $region20: #{_sum_mean_mul_stacked.1} parent=15 // pred_fallthru
        _
    $region16: #{_sum_mean_mul_stacked.1} parent=5 // pred_fallthru
      _
    %p132 = scmp.le.s32.totalorder 1, %s9
    %p133 = scmp.lt.s32.totalorder %s9, 3
    %p134 = pnand %p132, %p133
    %p135 = pneg %p134
    // Predicated region
    $region21: #{_sum_mean_mul_stacked.1} parent=5 // pred_check
      _
    $region22: #{_sum_mean_mul_stacked.1} parent=5 // pred_check_branch
      %137 = sbr.rel (%p134) target = $region24
    $region23: #{_sum_mean_mul_stacked.1} parent=5 // pred_region
      %s138 = ssub.s32 %s9, 1
      %p139 = scmp.lt.s32.totalorder %s18, 1
      %s140 = scalar_select %p139, %s18, 1
      %p141 = scmp.lt.s32.totalorder %s19, 0
      %s142 = scalar_select %p141, %s19, 0
      %s143 = sadd.s32 %s142, %s140
      %s144 = smul.addr %s143, 8
      %s145 = scalar_lea.vmem %s0, %s144
      %p146 = pneg %p49
      %p147 = pneg %p46
      %p148 = pneg %p75
      %p149 = pneg %p72
      %p150 = scmp.lt.s32.totalorder %s18, 1
      %s151 = scalar_select %p150, %s18, 1
      %s152 = scalar_lea.vmem %s1, %s151
      %p153 = pneg %p103
      %p154 = pneg %p100
      %p155 = scmp.lt.s32.totalorder %s18, 1
      %s156 = scalar_select %p155, %s18, 1
      %p157 = scmp.lt.s32.totalorder %s19, 0
      %s158 = scalar_select %p157, %s19, 0
      %s159 = sadd.s32 %s158, %s156
      %s160 = smul.addr %s159, 8
      %s161 = scalar_lea.vmem %s2, %s160
      %p162 = scmp.lt.s32.totalorder %s18, 1
      %s163 = scalar_select %p162, %s18, 1
      %p164 = scmp.lt.s32.totalorder %s19, 0
      %s165 = scalar_select %p164, %s19, 0
      %s166 = sadd.s32 %s165, %s163
      %s167 = smul.addr %s166, 8
      %s168 = scalar_lea.vmem %s0, %s167
      %p169 = scmp.lt.s32.totalorder %s18, 1
      %s170 = scalar_select %p169, %s18, 1
      %s171 = scalar_lea.vmem %s1, %s170
      %p172 = scmp.lt.s32.totalorder %s18, 1
      %s173 = scalar_select %p172, %s18, 1
      %p174 = scmp.lt.s32.totalorder %s19, 0
      %s175 = scalar_select %p174, %s19, 0
      %s176 = sadd.s32 %s175, %s173
      %s177 = smul.addr %s176, 8
      %s178 = scalar_lea.vmem %s2, %s177
      %p179 = scmp.eq.s32.totalorder %s19, 0
      // Predicated region
      $region25: #{_sum_mean_mul_stacked.1} parent=23 // pred_check
        %p180 = pneg %p179
      $region26: #{_sum_mean_mul_stacked.1} parent=23 // pred_check_branch
        %182 = sbr.rel (%p180) target = $region28
      $region27: #{_sum_mean_mul_stacked.1} parent=23 // pred_region
        %183 = vst [vmem:[#allocation2] sm:$0x1] 0.0
      $region28: #{_sum_mean_mul_stacked.1} parent=23 // pred_fallthru
        _
      %v184 = vld [vmem:[%s168] sm:$0xff]
      %v185 = vmul.f32 %v184, 2.0
      %186 = vst [vmem:[%s178] sm:$0xff] %v185
      %v187 = vld [vmem:[#allocation2] sm:$0x1]
      %v188 = vrot.slane %v184, 4
      %v189 = vadd.f32 %v184, %v188
      %v190 = vrot.slane %v189, 2
      %v191 = vadd.f32 %v189, %v190
      %v192 = vrot.slane %v191, 1
      %v193 = vadd.f32 %v191, %v192
      %v194 = vadd.f32 %v187, %v193
      %195 = vst [vmem:[#allocation2] sm:$0x1] %v194
      // Predicated region
      $region29: #{_sum_mean_mul_stacked.1} parent=23 // pred_check
        %p196 = pneg %p179
      $region30: #{_sum_mean_mul_stacked.1} parent=23 // pred_check_branch
        %198 = sbr.rel (%p196) target = $region32
      $region31: #{_sum_mean_mul_stacked.1} parent=23 // pred_region
        %v199 = vld [vmem:[#allocation2] sm:$0x1]
        %vm200 = vcmask 1040384
        %v201 = vsel %vm200, %v199, 0.0
        %202 = vadd.xlane.f32.xlu0 %v201
        %v203 = vpop.xlane.xlu0 %202
        %vm204 = vcmask 0
        %205 = vst.msk [vmem:[%s171] sm:$0x1] %vm204, %v203
      $region32: #{_sum_mean_mul_stacked.1} parent=23 // pred_fallthru
        _
      %p206 = scmp.lt.s32.totalorder %s18, 1
      %s207 = scalar_select %p206, %s18, 1
      %s208 = scalar_lea.vmem %s1, %s207
      %p209 = scmp.lt.s32.totalorder %s18, 1
      %s210 = scalar_select %p209, %s18, 1
      %p211 = scmp.lt.s32.totalorder %s19, 0
      %s212 = scalar_select %p211, %s19, 0
      %s213 = sadd.s32 %s212, %s210
      %s214 = smul.addr %s213, 8
      %s215 = scalar_lea.vmem %s2, %s214
      // Predicated region
      $region33: #{_sum_mean_mul_stacked.1} parent=23 // pred_check
        %p216 = pneg %p72
      $region34: #{_sum_mean_mul_stacked.1} parent=23 // pred_check_branch
        %218 = sbr.rel (%p216) target = $region36
      $region35: #{_sum_mean_mul_stacked.1} parent=23 // pred_region
        _
      $region36: #{_sum_mean_mul_stacked.1} parent=23 // pred_fallthru
        _
      // Predicated region
      $region37: #{_sum_mean_mul_stacked.1} parent=23 // pred_check
        %p219 = pneg %p100
      $region38: #{_sum_mean_mul_stacked.1} parent=23 // pred_check_branch
        %221 = sbr.rel (%p219) target = $region40
      $region39: #{_sum_mean_mul_stacked.1} parent=23 // pred_region
        _
      $region40: #{_sum_mean_mul_stacked.1} parent=23 // pred_fallthru
        _
    $region24: #{_sum_mean_mul_stacked.1} parent=5 // pred_fallthru
      _
    %p222 = scmp.le.s32.totalorder 2, %s9
    // Predicated region
    $region41: #{_sum_mean_mul_stacked.1} parent=5 // pred_check
      %p223 = pneg %p222
    $region42: #{_sum_mean_mul_stacked.1} parent=5 // pred_check_branch
      %225 = sbr.rel (%p223) target = $region44
    $region43: #{_sum_mean_mul_stacked.1} parent=5 // pred_region
      %s226 = ssub.s32 %s9, 2
      // Predicated region
      $region45: #{_sum_mean_mul_stacked.1} parent=43 // pred_check
        %p227 = pneg %p78
      $region46: #{_sum_mean_mul_stacked.1} parent=43 // pred_check_branch
        %229 = sbr.rel (%p227) target = $region48
      $region47: #{_sum_mean_mul_stacked.1} parent=43 // pred_region
        %p230 = scmp.lt.s32.totalorder %s20, 1
        %s231 = scalar_select %p230, %s20, 1
        %s232 = scalar_lea.vmem %s1, %s231
      $region48: #{_sum_mean_mul_stacked.1} parent=43 // pred_fallthru
        _
      // Predicated region
      $region49: #{_sum_mean_mul_stacked.1} parent=43 // pred_check
        %p233 = pneg %p106
      $region50: #{_sum_mean_mul_stacked.1} parent=43 // pred_check_branch
        %235 = sbr.rel (%p233) target = $region52
      $region51: #{_sum_mean_mul_stacked.1} parent=43 // pred_region
        %p236 = scmp.lt.s32.totalorder %s20, 1
        %s237 = scalar_select %p236, %s20, 1
        %p238 = scmp.lt.s32.totalorder %s21, 0
        %s239 = scalar_select %p238, %s21, 0
        %s240 = sadd.s32 %s239, %s237
        %s241 = smul.addr %s240, 8
        %s242 = scalar_lea.vmem %s2, %s241
      $region52: #{_sum_mean_mul_stacked.1} parent=43 // pred_fallthru
        _
    $region44: #{_sum_mean_mul_stacked.1} parent=5 // pred_fallthru
      _
  $region6: #{_sum_mean_mul_stacked.1} parent=0 // loop_footer
    %s13 = sadd.s32 1, %s9
  $region7: #{_sum_mean_mul_stacked.1} parent=0 // loop_footer_branch
    %8 = sbr.rel target = $region3
  $region8: #{_sum_mean_mul_stacked.1} parent=0 // loop_exit
    _

</llo_original>
